<compile_context>
chip_gen: v5e
topology: v5e:2x2
jax: 0.10.0
libtpu: 0.0.40
codegen_flags: <defaults>
</compile_context>

<pallas_src>
import functools
import math

import jax
import jax.numpy as jnp
from jax.experimental import pallas as pl
from jax.experimental.pallas import tpu as pltpu


def _round_up(x, m):
    return ((x + m - 1) // m) * m


def _pad_lanes(x, width):
    """Zero-pad the last (lane) axis of `x` up to `width` (no-op if equal)."""
    cur = x.shape[-1]
    if cur == width:
        return x
    zeros = jnp.zeros(x.shape[:-1] + (width - cur,), x.dtype)
    return jnp.concatenate([x, zeros], axis=-1)


def _attention3_kernel(q_ref, k_ref, v_ref, w_ref,
                       out_ref, probs_ref, arg_ref,
                       *, scale, lk_out, dv_out, arg_w):
    bt, lq, h = q_ref.shape
    lk = k_ref.shape[1]

    # Q' = tanh(Q @ w_omega): ONE (Bt*Lq, H) x (H, H) MXU matmul for the whole
    # batch block; tanh on the EUP.  The 1/sqrt(Dv) score scale is folded in
    # here (H lanes per row instead of Lk lanes per row later).
    q2 = q_ref[...].reshape(bt * lq, h)
    qw = jnp.tanh(jnp.dot(q2, w_ref[...], preferred_element_type=jnp.float32))
    qw = (qw * scale).reshape(bt, lq, h)

    # Scaled scores (Bt, Lq, Lk); batched contraction on H (no K^T materialized).
    s = jnp.einsum("blh,bkh->blk", qw, k_ref[...],
                   preferred_element_type=jnp.float32)

    # Numerically-stable softmax over keys.  Exact divide: probs is a
    # user-visible output and rows must sum to 1.
    m = jnp.max(s, axis=-1, keepdims=True)
    e = jnp.exp(s - m)
    p = e / jnp.sum(e, axis=-1, keepdims=True)

    # Attention output (Bt, Lq, Dv).
    o = jnp.einsum("blk,bkd->bld", p, v_ref[...],
                   preferred_element_type=jnp.float32)

    # argmax(P) == argmax(S) (softmax is monotone); reuse the row max m.
    # jnp.min over tied indices reproduces torch.argmax's first-max tie-break.
    lane = jax.lax.broadcasted_iota(jnp.int32, s.shape, 2)
    arg = jnp.min(jnp.where(s == m, lane, lk), axis=-1, keepdims=True)

    # Lane-dense stores: pad / broadcast to the padded output block widths so
    # the stores are full unmasked 128-lane vst's (no-ops at production sizes).
    probs_ref[...] = _pad_lanes(p, lk_out)
    out_ref[...] = _pad_lanes(o, dv_out)
    arg_ref[...] = jnp.broadcast_to(arg.astype(jnp.int32), (bt, lq, arg_w))


@jax.jit
def attention_3(input_Q, input_K, input_V, w_omega):
    """Pallas implementation of the DCRNN Attention forward.

    input_Q: (B, Lq, H)   input_K: (B, Lk, H)   input_V: (B, Lk, Dv)
    w_omega: (H, H)
    returns (att_output (B,Lq,Dv) f32, probs (B,Lq,Lk) f32, prob_arg (B,Lq) i32)
    """
    B, Lq, H = input_Q.shape
    _, Lk, Dv = input_V.shape
    scale = 1.0 / math.sqrt(Dv)          # PyTorch divides by sqrt(V.shape[2])

    # Batch blocking: largest divisor of B such that Bt*Lq rows fit the MXU
    # (256 systolic rows on v6e/v7x; also fine on v5e's 128).  For the toy
    # B=2, Lq=8 this gives Bt=B and a single grid step (grid overhead gone).
    # NOTE(v7x): a 1-step grid leaves the second TensorCore idle; with larger
    # B the grid has >=2 parallel steps and both TCs get work.
    row_target = 256
    bt_cap = max(1, row_target // max(Lq, 1))
    Bt = 1
    for d in range(1, B + 1):
        if B % d == 0 and d <= bt_cap:
            Bt = d
    grid_b = B // Bt

    # Padded *output* lane widths only (inputs are passed at true shapes; the
    # wrapper no longer materializes padded K/V copies in HBM).
    Lk_out = _round_up(max(Lk, 128), 128)
    Dv_out = _round_up(max(Dv, 128), 128)
    ARG_W = 128

    out_shapes = (
        jax.ShapeDtypeStruct((B, Lq, Dv_out), jnp.float32),   # att_output (lane-padded)
        jax.ShapeDtypeStruct((B, Lq, Lk_out), jnp.float32),   # probs (lane-padded)
        jax.ShapeDtypeStruct((B, Lq, ARG_W), jnp.int32),      # prob_arg (broadcast)
    )

    # Cost estimate at the TRUE (unpadded) input sizes; output bytes use the
    # lane-padded widths actually written.
    cost = pl.CostEstimate(
        flops=2 * B * Lq * (H * H + Lk * H + Lk * Dv),
        transcendentals=B * Lq * (H + Lk),
        bytes_accessed=4 * (B * Lq * H + B * Lk * H + B * Lk * Dv + H * H
                            + B * Lq * Dv_out + B * Lq * Lk_out + B * Lq * ARG_W),
    )

    out_p, probs_p, arg_p = pl.pallas_call(
        functools.partial(_attention3_kernel, scale=scale,
                          lk_out=Lk_out, dv_out=Dv_out, arg_w=ARG_W),
        out_shape=out_shapes,
        grid=(grid_b,),
        in_specs=[
            pl.BlockSpec((Bt, Lq, H), lambda b: (b, 0, 0)),
            pl.BlockSpec((Bt, Lk, H), lambda b: (b, 0, 0)),
            pl.BlockSpec((Bt, Lk, Dv), lambda b: (b, 0, 0)),
            pl.BlockSpec((H, H), lambda b: (0, 0)),            # shared weight
        ],
        out_specs=(
            pl.BlockSpec((Bt, Lq, Dv_out), lambda b: (b, 0, 0)),
            pl.BlockSpec((Bt, Lq, Lk_out), lambda b: (b, 0, 0)),
            pl.BlockSpec((Bt, Lq, ARG_W), lambda b: (b, 0, 0)),
        ),
        compiler_params=pltpu.CompilerParams(
            dimension_semantics=("parallel",),
            # Default scoped VMEM is ample at these sizes.  For production Lq
            # tiling raise this per-generation (~48-56 MiB on v7x's 64 MiB VMEM,
            # up to ~96-100 MiB on v5e/v6e's 128 MiB).
        ),
        cost_estimate=cost,
    )(input_Q, input_K, input_V, w_omega)

    # Strip the lane padding (cheap XLA slices, fused under jit).
    att_output = out_p[:, :, :Dv]
    probs = probs_p[:, :, :Lk]
    prob_arg = arg_p[:, :, 0]
    return att_output, probs, prob_arg


if __name__ == "__main__":
    # model_kwargs equivalent: num_nodes=4, rnn_units=8 -> hidden_state_size = 32
    B, Lq, Lk, H = 2, 8, 8, 32
    Dv = H

    key = jax.random.PRNGKey(0)
    kq, kk, kv, kw = jax.random.split(key, 4)
    input_Q = jax.random.normal(kq, (B, Lq, H), dtype=jnp.float32)
    input_K = jax.random.normal(kk, (B, Lk, H), dtype=jnp.float32)
    input_V = jax.random.normal(kv, (B, Lk, Dv), dtype=jnp.float32)
    # deterministic synthetic init for w_omega (torch.Tensor(H,H) is uninitialized)
    w_omega = jax.random.normal(kw, (H, H), dtype=jnp.float32) / math.sqrt(H)

    att_out, probs, prob_arg = attention_3(input_Q, input_K, input_V, w_omega)
    jax.block_until_ready((att_out, probs, prob_arg))

    # Pure-JAX reference (HIGHEST precision so the check is not dominated by
    # XLA's default bf16 matmul passes).
    hi = jax.lax.Precision.HIGHEST
    qw_ref = jnp.tanh(jnp.einsum("blh,hd->bld", input_Q, w_omega, precision=hi))
    s_ref = jnp.einsum("bld,bkd->blk", qw_ref, input_K, precision=hi) / math.sqrt(Dv)
    p_ref = jax.nn.softmax(s_ref, axis=-1)
    o_ref = jnp.einsum("blk,bkd->bld", p_ref, input_V, precision=hi)
    a_ref = jnp.argmax(p_ref, axis=-1).astype(jnp.int32)

    assert probs.shape == p_ref.shape and att_out.shape == o_ref.shape
    assert prob_arg.shape == a_ref.shape
    assert jnp.allclose(probs, p_ref, atol=2e-3, rtol=2e-3)
    assert jnp.allclose(att_out, o_ref, atol=2e-3, rtol=2e-3)
    assert jnp.array_equal(prob_arg, a_ref)

    print("KERNEL_OK")
</pallas_src>

<mosaic_0001>
module attributes {stable_mosaic.version = 11 : i64} {
  func.func @_attention3_kernel(%arg0: i32, %arg1: memref<2x8x32xf32, #tpu.memory_space<vmem>>, %arg2: memref<2x8x32xf32, #tpu.memory_space<vmem>>, %arg3: memref<2x8x32xf32, #tpu.memory_space<vmem>>, %arg4: memref<32x32xf32, #tpu.memory_space<vmem>>, %arg5: memref<2x8x128xf32, #tpu.memory_space<vmem>>, %arg6: memref<2x8x128xf32, #tpu.memory_space<vmem>>, %arg7: memref<2x8x128xi32, #tpu.memory_space<vmem>>) attributes {dimension_semantics = [#tpu.dimension_semantics<parallel>], iteration_bounds = array<i64: 1>, scalar_prefetch = 0 : i64, scratch_operands = 0 : i64, tpu.core_type = #tpu.core_type<tc>, window_params = [{transform_indices = @transform_0, window_bounds = array<i64: 2, 8, 32>}, {transform_indices = @transform_1, window_bounds = array<i64: 2, 8, 32>}, {transform_indices = @transform_2, window_bounds = array<i64: 2, 8, 32>}, {pipeline_mode = #tpu.pipeline_mode<synchronous>, transform_indices = @transform_3, window_bounds = array<i64: 32, 32>}, {transform_indices = @transform_4, window_bounds = array<i64: 2, 8, 128>}, {transform_indices = @transform_5, window_bounds = array<i64: 2, 8, 128>}, {transform_indices = @transform_6, window_bounds = array<i64: 2, 8, 128>}]} {
    %c0 = arith.constant 0 : index
    %c0_0 = arith.constant 0 : index
    %c0_1 = arith.constant 0 : index
    %0 = vector.load %arg1[%c0, %c0_0, %c0_1] : memref<2x8x32xf32, #tpu.memory_space<vmem>>, vector<2x8x32xf32>
    %1 = vector.shape_cast %0 : vector<2x8x32xf32> to vector<16x32xf32>
    %c0_2 = arith.constant 0 : index
    %c0_3 = arith.constant 0 : index
    %2 = vector.load %arg4[%c0_2, %c0_3] : memref<32x32xf32, #tpu.memory_space<vmem>>, vector<32x32xf32>
    %cst = arith.constant dense<0.000000e+00> : vector<16x32xf32>
    %3 = tpu.matmul %1, %2, %cst {dimension_numbers = #tpu.dot_dimension_numbers<[1], [0], [0], [1], [0, 0, 1, 1], [], []>} : vector<16x32xf32>, vector<32x32xf32>, vector<16x32xf32> -> vector<16x32xf32>
    %4 = math.tanh %3 : vector<16x32xf32>
    %cst_4 = arith.constant 0.176776692 : f32
    %5 = vector.broadcast %cst_4 : f32 to vector<16x32xf32>
    %6 = arith.mulf %4, %5 : vector<16x32xf32>
    %7 = vector.shape_cast %6 : vector<16x32xf32> to vector<2x8x32xf32>
    %c0_5 = arith.constant 0 : index
    %c0_6 = arith.constant 0 : index
    %c0_7 = arith.constant 0 : index
    %8 = vector.load %arg2[%c0_5, %c0_6, %c0_7] : memref<2x8x32xf32, #tpu.memory_space<vmem>>, vector<2x8x32xf32>
    "tpu.trace_start"() <{level = 10 : i32, message = "blh,bkh->blk"}> : () -> ()
    %cst_8 = arith.constant dense<0.000000e+00> : vector<2x8x8xf32>
    %9 = tpu.matmul %7, %8, %cst_8 {dimension_numbers = #tpu.dot_dimension_numbers<[2], [2], [1], [1], [0, 0, 0, 1, 1, 1], [0], [0]>} : vector<2x8x32xf32>, vector<2x8x32xf32>, vector<2x8x8xf32> -> vector<2x8x8xf32>
    "tpu.trace_stop"() : () -> ()
    %cst_9 = arith.constant dense<0xFF800000> : vector<2x8xf32>
    %10 = vector.multi_reduction <maximumf>, %9, %cst_9 [2] : vector<2x8x8xf32> to vector<2x8xf32>
    %11 = vector.shape_cast %10 : vector<2x8xf32> to vector<2x8x1xf32>
    %12 = vector.broadcast %11 : vector<2x8x1xf32> to vector<2x8x8xf32>
    %13 = arith.subf %9, %12 : vector<2x8x8xf32>
    %14 = math.exp %13 : vector<2x8x8xf32>
    %cst_10 = arith.constant dense<0.000000e+00> : vector<2x8xf32>
    %15 = vector.multi_reduction <add>, %14, %cst_10 [2] : vector<2x8x8xf32> to vector<2x8xf32>
    %16 = vector.shape_cast %15 : vector<2x8xf32> to vector<2x8x1xf32>
    %17 = vector.broadcast %16 : vector<2x8x1xf32> to vector<2x8x8xf32>
    %18 = arith.divf %14, %17 : vector<2x8x8xf32>
    %c0_11 = arith.constant 0 : index
    %c0_12 = arith.constant 0 : index
    %c0_13 = arith.constant 0 : index
    %19 = vector.load %arg3[%c0_11, %c0_12, %c0_13] : memref<2x8x32xf32, #tpu.memory_space<vmem>>, vector<2x8x32xf32>
    "tpu.trace_start"() <{level = 10 : i32, message = "blk,bkd->bld"}> : () -> ()
    %cst_14 = arith.constant dense<0.000000e+00> : vector<2x8x32xf32>
    %20 = tpu.matmul %18, %19, %cst_14 {dimension_numbers = #tpu.dot_dimension_numbers<[2], [1], [1], [2], [0, 0, 0, 1, 1, 2], [0], [0]>} : vector<2x8x8xf32>, vector<2x8x32xf32>, vector<2x8x32xf32> -> vector<2x8x32xf32>
    "tpu.trace_stop"() : () -> ()
    %21 = tpu.iota {dimensions = array<i32: 2>} : vector<2x8x8xi32>
    %22 = vector.broadcast %11 : vector<2x8x1xf32> to vector<2x8x8xf32>
    %23 = arith.cmpf oeq, %9, %22 : vector<2x8x8xf32>
    %c8_i32 = arith.constant 8 : i32
    %24 = vector.broadcast %c8_i32 : i32 to vector<2x8x8xi32>
    %25 = arith.select %23, %21, %24 : vector<2x8x8xi1>, vector<2x8x8xi32>
    %cst_15 = arith.constant dense<2147483647> : vector<2x8xi32>
    %26 = vector.multi_reduction <minsi>, %25, %cst_15 [2] : vector<2x8x8xi32> to vector<2x8xi32>
    %27 = vector.shape_cast %26 : vector<2x8xi32> to vector<2x8x1xi32>
    %cst_16 = arith.constant 0.000000e+00 : f32
    %28 = vector.broadcast %cst_16 : f32 to vector<2x8x120xf32>
    %29 = tpu.concatenate %18, %28 in 2 : vector<2x8x8xf32>, vector<2x8x120xf32> -> vector<2x8x128xf32>
    %c0_17 = arith.constant 0 : index
    %c0_18 = arith.constant 0 : index
    %c0_19 = arith.constant 0 : index
    %30 = vector.load %arg6[%c0_17, %c0_18, %c0_19] : memref<2x8x128xf32, #tpu.memory_space<vmem>>, vector<2x8x128xf32>
    tpu.vector_store %arg6[%c0_17, %c0_18, %c0_19], %29 {strides = array<i32>} : memref<2x8x128xf32, #tpu.memory_space<vmem>>, vector<2x8x128xf32>,
    %cst_20 = arith.constant 0.000000e+00 : f32
    %31 = vector.broadcast %cst_20 : f32 to vector<2x8x96xf32>
    %32 = tpu.concatenate %20, %31 in 2 : vector<2x8x32xf32>, vector<2x8x96xf32> -> vector<2x8x128xf32>
    %c0_21 = arith.constant 0 : index
    %c0_22 = arith.constant 0 : index
    %c0_23 = arith.constant 0 : index
    %33 = vector.load %arg5[%c0_21, %c0_22, %c0_23] : memref<2x8x128xf32, #tpu.memory_space<vmem>>, vector<2x8x128xf32>
    tpu.vector_store %arg5[%c0_21, %c0_22, %c0_23], %32 {strides = array<i32>} : memref<2x8x128xf32, #tpu.memory_space<vmem>>, vector<2x8x128xf32>,
    %34 = vector.shape_cast %27 : vector<2x8x1xi32> to vector<2x8x1xi32>
    %35 = vector.broadcast %34 : vector<2x8x1xi32> to vector<2x8x128xi32>
    %c0_24 = arith.constant 0 : index
    %c0_25 = arith.constant 0 : index
    %c0_26 = arith.constant 0 : index
    %36 = vector.load %arg7[%c0_24, %c0_25, %c0_26] : memref<2x8x128xi32, #tpu.memory_space<vmem>>, vector<2x8x128xi32>
    tpu.vector_store %arg7[%c0_24, %c0_25, %c0_26], %35 {strides = array<i32>} : memref<2x8x128xi32, #tpu.memory_space<vmem>>, vector<2x8x128xi32>,
    return
  }
  func.func @transform_0(%arg0: i32) -> (i32, i32, i32) {
    %c0_i32 = arith.constant 0 : i32
    %c0_i32_0 = arith.constant 0 : i32
    %c0_i32_1 = arith.constant 0 : i32
    return %arg0, %c0_i32, %c0_i32_0 : i32, i32, i32
  }
  func.func @transform_1(%arg0: i32) -> (i32, i32, i32) {
    %c0_i32 = arith.constant 0 : i32
    %c0_i32_0 = arith.constant 0 : i32
    %c0_i32_1 = arith.constant 0 : i32
    return %arg0, %c0_i32, %c0_i32_0 : i32, i32, i32
  }
  func.func @transform_2(%arg0: i32) -> (i32, i32, i32) {
    %c0_i32 = arith.constant 0 : i32
    %c0_i32_0 = arith.constant 0 : i32
    %c0_i32_1 = arith.constant 0 : i32
    return %arg0, %c0_i32, %c0_i32_0 : i32, i32, i32
  }
  func.func @transform_3(%arg0: i32) -> (i32, i32) {
    %c0_i32 = arith.constant 0 : i32
    %c0_i32_0 = arith.constant 0 : i32
    %c0_i32_1 = arith.constant 0 : i32
    return %c0_i32, %c0_i32_0 : i32, i32
  }
  func.func @transform_4(%arg0: i32) -> (i32, i32, i32) {
    %c0_i32 = arith.constant 0 : i32
    %c0_i32_0 = arith.constant 0 : i32
    %c0_i32_1 = arith.constant 0 : i32
    return %arg0, %c0_i32, %c0_i32_0 : i32, i32, i32
  }
  func.func @transform_5(%arg0: i32) -> (i32, i32, i32) {
    %c0_i32 = arith.constant 0 : i32
    %c0_i32_0 = arith.constant 0 : i32
    %c0_i32_1 = arith.constant 0 : i32
    return %arg0, %c0_i32, %c0_i32_0 : i32, i32, i32
  }
  func.func @transform_6(%arg0: i32) -> (i32, i32, i32) {
    %c0_i32 = arith.constant 0 : i32
    %c0_i32_0 = arith.constant 0 : i32
    %c0_i32_1 = arith.constant 0 : i32
    return %arg0, %c0_i32, %c0_i32_0 : i32, i32, i32
  }
}

</mosaic_0001>

<llo_original>
// kernel: attention_3.1
$region0: #{attention_3.1}
  #allocation0 [shape = 'u32[]', space=smem, size = 0x4, offset = 0x4, fixed_abs, tag = 'smem constant byte address 0x4 - core index']
  #allocation1 [shape = 'u32[72,128]{1,0:T(1,128)}', space=vmem, size = 0x9000, scoped, tag = 'internal scratch']
  %s0 = inlined_call_operand.hbm [shape: f32[2,8,32], index: 0, kind: input, shape index: {}]
  %s1 = inlined_call_operand.hbm [shape: f32[2,8,32], index: 1, kind: input, shape index: {}]
  %s2 = inlined_call_operand.hbm [shape: f32[2,8,32], index: 2, kind: input, shape index: {}]
  %s3 = inlined_call_operand.hbm [shape: f32[32,32], index: 3, kind: input, shape index: {}]
  %s4 = inlined_call_operand.hbm [shape: f32[2,8,128], index: 4, kind: output, shape index: {0}]
  %s5 = inlined_call_operand.hbm [shape: f32[2,8,128], index: 5, kind: output, shape index: {1}]
  %s6 = inlined_call_operand.vmem [shape: s32[2,8,128], index: 6, kind: output, shape index: {2}]
  %7 = xla_tuple %s4, %s5, %s6
  %s8 = sld [smem:[#allocation0]]
  $region58: #{attention_3.1} parent=0
    _
  %s10 = ssub.s32 1, %s8
  %s11 = scalar_select 0, %s10, %s8
  $region1: #{attention_3.1} parent=0
    #allocation2 [shape = 'u8[8192]{0}', space=vmem, size = 0x2000, scoped, tag = 'input window, operand 0, single buffered']
    #allocation3 [shape = 's32[1]{0}', space=sflag, size = 0x4, scoped, tag = 'scoped memory for attention_3.1']
    #allocation4 [shape = 's32[1]{0}', space=sflag, size = 0x4, scoped, tag = 'scoped memory for attention_3.1']
    #allocation5 [shape = 'u8[8192]{0}', space=vmem, size = 0x2000, scoped, tag = 'input window, operand 1, single buffered']
    #allocation6 [shape = 's32[1]{0}', space=sflag, size = 0x4, scoped, tag = 'scoped memory for attention_3.1']
    #allocation7 [shape = 'u8[8192]{0}', space=vmem, size = 0x2000, scoped, tag = 'input window, operand 2, single buffered']
    #allocation8 [shape = 'u8[16384]{0}', space=vmem, size = 0x4000, scoped, tag = 'input window, operand 3, single buffered']
    #allocation9 [shape = 's32[1]{0}', space=sflag, size = 0x4, scoped, tag = 'scoped memory for attention_3.1']
    #allocation10 [shape = 'u8[8192]{0}', space=vmem, size = 0x2000, scoped, tag = 'output window, operand 0, single buffered']
    #allocation11 [shape = 'u8[8192]{0}', space=vmem, size = 0x2000, scoped, tag = 'output window, operand 1, single buffered']
    #allocation12 [shape = 's32[1]{0}', space=sflag, size = 0x4, scoped, tag = 'scoped memory for attention_3.1']
    %12 = vsyncpa [#allocation3], 0
    %13 = vsyncpa [#allocation6], 0
    %14 = vsyncpa [#allocation9], 0
    %15 = vsyncpa [#allocation4], 0
    %16 = vsyncpa [#allocation12], 0
    // Predicated region
    $region2: #{attention_3.1} parent=1 // pred_check
      _
    $region3: #{attention_3.1} parent=1 // pred_check_branch
      %18 = sbr.rel (0) target = $region5
    $region4: #{attention_3.1} parent=1 // pred_region
      %20 = vsyncadd [#allocation3], 0
      %s21 = sshll.u32 %s0, 4
      %s22 = int_to_ptr.hbm [resolvable:$true] %s21
      %s23 = sshll.u32 [#allocation2], 4
      %s24 = int_to_ptr.vmem [resolvable:$true] %s23
      %29 = dma.hbm_to_vmem [thread:$0]  %s22, 256, %s24, [#allocation3], 128, 128, 8
    $region5: #{attention_3.1} parent=1 // pred_fallthru
      _
    // Predicated region
    $region6: #{attention_3.1} parent=1 // pred_check
      _
    $region7: #{attention_3.1} parent=1 // pred_check_branch
      %31 = sbr.rel (0) target = $region9
    $region8: #{attention_3.1} parent=1 // pred_region
      %33 = vsyncadd [#allocation6], 0
      %s34 = sshll.u32 %s1, 4
      %s35 = int_to_ptr.hbm [resolvable:$true] %s34
      %s36 = sshll.u32 [#allocation5], 4
      %s37 = int_to_ptr.vmem [resolvable:$true] %s36
      %42 = dma.hbm_to_vmem [thread:$0]  %s35, 256, %s37, [#allocation6], 128, 128, 8
    $region9: #{attention_3.1} parent=1 // pred_fallthru
      _
    // Predicated region
    $region10: #{attention_3.1} parent=1 // pred_check
      _
    $region11: #{attention_3.1} parent=1 // pred_check_branch
      %44 = sbr.rel (0) target = $region13
    $region12: #{attention_3.1} parent=1 // pred_region
      %46 = vsyncadd [#allocation6], 0
      %s47 = sshll.u32 %s2, 4
      %s48 = int_to_ptr.hbm [resolvable:$true] %s47
      %s49 = sshll.u32 [#allocation7], 4
      %s50 = int_to_ptr.vmem [resolvable:$true] %s49
      %55 = dma.hbm_to_vmem [thread:$0]  %s48, 256, %s50, [#allocation6], 128, 128, 8
    $region13: #{attention_3.1} parent=1 // pred_fallthru
      _
    // Predicated region
    $region14: #{attention_3.1} parent=1 // pred_check
      _
    $region15: #{attention_3.1} parent=1 // pred_check_branch
      %57 = sbr.rel (0) target = $region17
    $region16: #{attention_3.1} parent=1 // pred_region
      %59 = vsyncadd [#allocation9], 0
      %s60 = sshll.u32 %s3, 4
      %s61 = int_to_ptr.hbm [resolvable:$true] %s60
      %s62 = sshll.u32 [#allocation8], 4
      %s63 = int_to_ptr.vmem [resolvable:$true] %s62
      %68 = dma.hbm_to_vmem [thread:$0]  %s61, 512, %s63, [#allocation9], 128, 128, 8
    $region17: #{attention_3.1} parent=1 // pred_fallthru
      _
    // Predicated region
    $region18: #{attention_3.1} parent=1 // pred_check
      _
    $region19: #{attention_3.1} parent=1 // pred_check_branch
      %70 = sbr.rel (0) target = $region21
    $region20: #{attention_3.1} parent=1 // pred_region
      %72 = dma.done [#allocation3], 256
    $region21: #{attention_3.1} parent=1 // pred_fallthru
      _
    // Predicated region
    $region22: #{attention_3.1} parent=1 // pred_check
      _
    $region23: #{attention_3.1} parent=1 // pred_check_branch
      %74 = sbr.rel (0) target = $region25
    $region24: #{attention_3.1} parent=1 // pred_region
      %76 = dma.done [#allocation6], 256
    $region25: #{attention_3.1} parent=1 // pred_fallthru
      _
    // Predicated region
    $region26: #{attention_3.1} parent=1 // pred_check
      _
    $region27: #{attention_3.1} parent=1 // pred_check_branch
      %78 = sbr.rel (0) target = $region29
    $region28: #{attention_3.1} parent=1 // pred_region
      %80 = dma.done [#allocation6], 256
    $region29: #{attention_3.1} parent=1 // pred_fallthru
      _
    // Predicated region
    $region30: #{attention_3.1} parent=1 // pred_check
      _
    $region31: #{attention_3.1} parent=1 // pred_check_branch
      %82 = sbr.rel (0) target = $region33
    $region32: #{attention_3.1} parent=1 // pred_region
      %84 = dma.done [#allocation9], 512
    $region33: #{attention_3.1} parent=1 // pred_fallthru
      _
    %v85 = vld [vmem:[#allocation2] sm:$0xff]
    %v86 = vld [vmem:[#allocation2 + $0x8] sm:$0xff]
    %v87 = vld [vmem:[#allocation8] sm:$0xff]
    %v88 = vld [vmem:[#allocation8 + $0x8] sm:$0xff]
    %v89 = vld [vmem:[#allocation8 + $0x10] sm:$0xff]
    %v90 = vld [vmem:[#allocation8 + $0x18] sm:$0xff]
    %vm91 = vcmask 261120
    %v93 = vsel %vm91, %v85, 0
    %v96 = vsel %vm91, %v86, 0
    %98 = vmatpush.msra.mxu0 0.0
    %99 = vmatpush.msra.mxu0 0.0
    %100 = vmatpush.msra.mxu0 0.0
    %101 = vmatpush.msra.mxu0 0.0
    %102 = vmatpush.msra.mxu0 0.0
    %103 = vmatpush.msra.mxu0 0.0
    %104 = vmatpush.msra.mxu0 0.0
    %105 = vmatpush.msra.mxu0 0.0
    %106 = vmatpush.msra.mxu0 0.0
    %107 = vmatpush.msra.mxu0 0.0
    %108 = vmatpush.msra.mxu0 0.0
    %109 = vmatpush.msra.mxu0 0.0
    %110 = vmatpush.msra.mxu0 %v90
    %111 = vmatpush.msra.mxu0 %v89
    %112 = vmatpush.msra.mxu0 %v88
    %113 = vmatpush.msra.mxu0 %v87
    %114 = vmatmul.f32.gmra.mxu0 %v93
    %v115 = vpop.f32.mrf.mxu0
    %v116 = vadd.f32 0.0, %v115
    %117 = vmatmul.f32.gmra.mxu0 %v96
    %v118 = vpop.f32.mrf.mxu0
    %v119 = vadd.f32 0.0, %v118
    %120 = vdwg.mxu0
    %v121 = vtanh.pop %v116
    %v122 = vtanh.pop %v119
    %v123 = vmul.f32 %v121, 0.17677669
    %v124 = vmul.f32 %v122, 0.17677669
    %v125 = vld [vmem:[#allocation5] sm:$0xff]
    %v126 = vld [vmem:[#allocation5 + $0x8] sm:$0xff]
    %v128 = vsel %vm91, %v123, 0
    %v131 = vsel %vm91, %v125, 0
    %133 = vmatpush.xpose.msra.mxu0 0.0
    %134 = vmatpush.xpose.msra.mxu0 0.0
    %135 = vmatpush.xpose.msra.mxu0 0.0
    %136 = vmatpush.xpose.msra.mxu0 0.0
    %137 = vmatpush.xpose.msra.mxu0 0.0
    %138 = vmatpush.xpose.msra.mxu0 0.0
    %139 = vmatpush.xpose.msra.mxu0 0.0
    %140 = vmatpush.xpose.msra.mxu0 0.0
    %141 = vmatpush.xpose.msra.mxu0 0.0
    %142 = vmatpush.xpose.msra.mxu0 0.0
    %143 = vmatpush.xpose.msra.mxu0 0.0
    %144 = vmatpush.xpose.msra.mxu0 0.0
    %145 = vmatpush.xpose.msra.mxu0 0.0
    %146 = vmatpush.xpose.msra.mxu0 0.0
    %147 = vmatpush.xpose.msra.mxu0 0.0
    %148 = vmatpush.xpose.msra.mxu0 %v131
    %149 = vmatmul.f32.gmra.mxu0 %v128
    %v150 = vpop.f32.mrf.mxu0
    %v151 = vadd.f32 0.0, %v150
    %152 = vdwg.mxu0
    %v154 = vsel %vm91, %v124, 0
    %v157 = vsel %vm91, %v126, 0
    %159 = vmatpush.xpose.msra.mxu0 0.0
    %160 = vmatpush.xpose.msra.mxu0 0.0
    %161 = vmatpush.xpose.msra.mxu0 0.0
    %162 = vmatpush.xpose.msra.mxu0 0.0
    %163 = vmatpush.xpose.msra.mxu0 0.0
    %164 = vmatpush.xpose.msra.mxu0 0.0
    %165 = vmatpush.xpose.msra.mxu0 0.0
    %166 = vmatpush.xpose.msra.mxu0 0.0
    %167 = vmatpush.xpose.msra.mxu0 0.0
    %168 = vmatpush.xpose.msra.mxu0 0.0
    %169 = vmatpush.xpose.msra.mxu0 0.0
    %170 = vmatpush.xpose.msra.mxu0 0.0
    %171 = vmatpush.xpose.msra.mxu0 0.0
    %172 = vmatpush.xpose.msra.mxu0 0.0
    %173 = vmatpush.xpose.msra.mxu0 0.0
    %174 = vmatpush.xpose.msra.mxu0 %v157
    %175 = vmatmul.f32.gmra.mxu0 %v154
    %v176 = vpop.f32.mrf.mxu0
    %v177 = vadd.f32 0.0, %v176
    %178 = vdwg.mxu0
    %vm179 = vcmask 64512
    %v180 = vsel %vm179, %v151, -inf
    %181 = vmax.xlane.f32.xlu0 %v180
    %v182 = vpop.xlane.xlu0 %181
    %v183 = vsel %vm179, %v177, -inf
    %184 = vmax.xlane.f32.xlu0 %v183
    %v185 = vpop.xlane.xlu0 %184
    %v186 = vsub.f32 %v151, %v182
    %v187 = vsub.f32 %v177, %v185
    %v188 = vmul.f32 %v186, 1.442695
    %v189 = vpow.pop %v188
    %v190 = vmul.f32 %v187, 1.442695
    %v191 = vpow.pop %v190
    %v192 = vsel %vm179, %v189, 0.0
    %193 = vadd.xlane.f32.xlu0 %v192
    %v194 = vpop.xlane.xlu0 %193
    %v195 = vsel %vm179, %v191, 0.0
    %196 = vadd.xlane.f32.xlu0 %v195
    %v197 = vpop.xlane.xlu0 %196
    %v198 = vrcp.pop %v194
    %v199 = vmul.f32 %v194, %v198
    %v200 = vsub.f32 1.0, %v199
    %v201 = vmul.f32 %v198, %v200
    %v202 = vadd.f32 %v198, %v201
    %vm203 = vweird.f32 %v194
    %vm204 = vweird.f32 %v198
    %vm205 = vmor %vm203, %vm204
    %v206 = vsel %vm205, %v198, %v202
    %v207 = vand.u32 2147483647, %v194
    %vm208 = vcmp.eq.f32.partialorder %v207, 8.507059e+37
    %v209 = vand.u32 %v194, 2147483648
    %v210 = vor.u32 1.1754944e-38, %v209
    %v211 = vsel %vm208, %v210, %v206
    %v212 = vmul.f32 %v189, %v211
    %v213 = vrcp.pop %v197
    %v214 = vmul.f32 %v197, %v213
    %v215 = vsub.f32 1.0, %v214
    %v216 = vmul.f32 %v213, %v215
    %v217 = vadd.f32 %v213, %v216
    %vm218 = vweird.f32 %v197
    %vm219 = vweird.f32 %v213
    %vm220 = vmor %vm218, %vm219
    %v221 = vsel %vm220, %v213, %v217
    %v222 = vand.u32 2147483647, %v197
    %vm223 = vcmp.eq.f32.partialorder %v222, 8.507059e+37
    %v224 = vand.u32 %v197, 2147483648
    %v225 = vor.u32 1.1754944e-38, %v224
    %v226 = vsel %vm223, %v225, %v221
    %v227 = vmul.f32 %v191, %v226
    %v228 = vld [vmem:[#allocation7] sm:$0xff]
    %v229 = vld [vmem:[#allocation7 + $0x8] sm:$0xff]
    %v231 = vsel %vm179, %v212, 0
    %233 = vmatpush.msra.mxu0 0.0
    %234 = vmatpush.msra.mxu0 0.0
    %235 = vmatpush.msra.mxu0 0.0
    %236 = vmatpush.msra.mxu0 0.0
    %237 = vmatpush.msra.mxu0 0.0
    %238 = vmatpush.msra.mxu0 0.0
    %239 = vmatpush.msra.mxu0 0.0
    %240 = vmatpush.msra.mxu0 0.0
    %241 = vmatpush.msra.mxu0 0.0
    %242 = vmatpush.msra.mxu0 0.0
    %243 = vmatpush.msra.mxu0 0.0
    %244 = vmatpush.msra.mxu0 0.0
    %245 = vmatpush.msra.mxu0 0.0
    %246 = vmatpush.msra.mxu0 0.0
    %247 = vmatpush.msra.mxu0 0.0
    %248 = vmatpush.msra.mxu0 %v228
    %249 = vmatmul.f32.gmra.mxu0 %v231
    %v250 = vpop.f32.mrf.mxu0
    %v251 = vadd.f32 0.0, %v250
    %252 = vdwg.mxu0
    %v254 = vsel %vm179, %v227, 0
    %256 = vmatpush.msra.mxu0 0.0
    %257 = vmatpush.msra.mxu0 0.0
    %258 = vmatpush.msra.mxu0 0.0
    %259 = vmatpush.msra.mxu0 0.0
    %260 = vmatpush.msra.mxu0 0.0
    %261 = vmatpush.msra.mxu0 0.0
    %262 = vmatpush.msra.mxu0 0.0
    %263 = vmatpush.msra.mxu0 0.0
    %264 = vmatpush.msra.mxu0 0.0
    %265 = vmatpush.msra.mxu0 0.0
    %266 = vmatpush.msra.mxu0 0.0
    %267 = vmatpush.msra.mxu0 0.0
    %268 = vmatpush.msra.mxu0 0.0
    %269 = vmatpush.msra.mxu0 0.0
    %270 = vmatpush.msra.mxu0 0.0
    %271 = vmatpush.msra.mxu0 %v229
    %272 = vmatmul.f32.gmra.mxu0 %v254
    %v273 = vpop.f32.mrf.mxu0
    %v274 = vadd.f32 0.0, %v273
    %275 = vdwg.mxu0
    %v276 = vlaneseq
    %v277 = vand.u32 %v276, 127
    %vm278 = vcmp.eq.f32.partialorder %v151, %v182
    %vm279 = vcmp.eq.f32.partialorder %v177, %v185
    %v280 = vsel %vm278, %v277, 8
    %v281 = vsel %vm279, %v277, 8
    %v282 = vsel %vm179, %v280, 2147483647
    %v283 = vand.u32 %v282, 65535
    %v284 = vshra.s32 %v282, 16
    %v285 = vcvt.s32.f32 %v283
    %v286 = vcvt.s32.f32 %v284
    %287 = vmin.xlane.f32.xlu0 %v286
    %v288 = vpop.xlane.xlu0 %287
    %vm289 = vcmp.eq.f32.partialorder %v286, %v288
    %v290 = vsel %vm289, %v285, inf
    %291 = vmin.xlane.f32.xlu0 %v290
    %v292 = vpop.xlane.xlu0 %291
    %v293 = vcvt.f32.s32 %v292
    %v294 = vcvt.f32.s32 %v288
    %v295 = vshll.u32 %v294, 16
    %v296 = vadd.s32 %v295, %v293
    %v297 = vsel %vm179, %v281, 2147483647
    %v298 = vand.u32 %v297, 65535
    %v299 = vshra.s32 %v297, 16
    %v300 = vcvt.s32.f32 %v298
    %v301 = vcvt.s32.f32 %v299
    %302 = vmin.xlane.f32.xlu0 %v301
    %v303 = vpop.xlane.xlu0 %302
    %vm304 = vcmp.eq.f32.partialorder %v301, %v303
    %v305 = vsel %vm304, %v300, inf
    %306 = vmin.xlane.f32.xlu0 %v305
    %v307 = vpop.xlane.xlu0 %306
    %v308 = vcvt.f32.s32 %v307
    %v309 = vcvt.f32.s32 %v303
    %v310 = vshll.u32 %v309, 16
    %v311 = vadd.s32 %v310, %v308
    %v312 = vsel %vm179, %v212, 0.0
    %v313 = vsel %vm179, %v227, 0.0
    %314 = vst [vmem:[#allocation11] sm:$0xff] %v312
    %315 = vst [vmem:[#allocation11 + $0x8] sm:$0xff] %v313
    %v316 = vsel %vm91, %v251, 0.0
    %v317 = vsel %vm91, %v274, 0.0
    %318 = vst [vmem:[#allocation10] sm:$0xff] %v316
    %319 = vst [vmem:[#allocation10 + $0x8] sm:$0xff] %v317
    %320 = vst [vmem:[%s6] sm:$0xff] %v296
    %321 = vst [vmem:[%s6 + $0x8] sm:$0xff] %v311
    // Predicated region
    $region34: #{attention_3.1} parent=1 // pred_check
      _
    $region35: #{attention_3.1} parent=1 // pred_check_branch
      %323 = sbr.rel (0) target = $region37
    $region36: #{attention_3.1} parent=1 // pred_region
      %325 = vsyncadd [#allocation4], 0
      %s326 = sshll.u32 [#allocation10], 4
      %s327 = int_to_ptr.vmem [resolvable:$true] %s326
      %s328 = sshll.u32 %s4, 4
      %s329 = int_to_ptr.hbm [resolvable:$true] %s328
      %334 = dma.vmem_to_hbm [thread:$0]  %s327, 256, %s329, [#allocation4], 128, 128, 8
    $region37: #{attention_3.1} parent=1 // pred_fallthru
      _
    // Predicated region
    $region38: #{attention_3.1} parent=1 // pred_check
      _
    $region39: #{attention_3.1} parent=1 // pred_check_branch
      %336 = sbr.rel (0) target = $region41
    $region40: #{attention_3.1} parent=1 // pred_region
      %338 = vsyncadd [#allocation12], 0
      %s339 = sshll.u32 [#allocation11], 4
      %s340 = int_to_ptr.vmem [resolvable:$true] %s339
      %s341 = sshll.u32 %s5, 4
      %s342 = int_to_ptr.hbm [resolvable:$true] %s341
      %347 = dma.vmem_to_hbm [thread:$0]  %s340, 256, %s342, [#allocation12], 128, 128, 8
    $region41: #{attention_3.1} parent=1 // pred_fallthru
      _
    // Predicated region
    $region42: #{attention_3.1} parent=1 // pred_check
      _
    $region43: #{attention_3.1} parent=1 // pred_check_branch
      %349 = sbr.rel (0) target = $region45
    $region44: #{attention_3.1} parent=1 // pred_region
      _
    $region45: #{attention_3.1} parent=1 // pred_fallthru
      _
    // Predicated region
    $region46: #{attention_3.1} parent=1 // pred_check
      _
    $region47: #{attention_3.1} parent=1 // pred_check_branch
      %351 = sbr.rel (0) target = $region49
    $region48: #{attention_3.1} parent=1 // pred_region
      %353 = dma.done [#allocation4], 256
    $region49: #{attention_3.1} parent=1 // pred_fallthru
      _
    // Predicated region
    $region50: #{attention_3.1} parent=1 // pred_check
      _
    $region51: #{attention_3.1} parent=1 // pred_check_branch
      %355 = sbr.rel (0) target = $region53
    $region52: #{attention_3.1} parent=1 // pred_region
      %357 = dma.done [#allocation12], 256
    $region53: #{attention_3.1} parent=1 // pred_fallthru
      _
    // Predicated region
    $region54: #{attention_3.1} parent=1 // pred_check
      _
    $region55: #{attention_3.1} parent=1 // pred_check_branch
      %359 = sbr.rel (0) target = $region57
    $region56: #{attention_3.1} parent=1 // pred_region
      _
    $region57: #{attention_3.1} parent=1 // pred_fallthru
      _
    %360 = vsyncpa [#allocation3], 1
    %361 = vsyncpa [#allocation6], 1
    %362 = vsyncpa [#allocation9], 1
    %363 = vsyncpa [#allocation4], 1
    %364 = vsyncpa [#allocation12], 1

</llo_original>
